<compile_context>
chip_gen: v5e
topology: v5e:2x2
jax: 0.10.0
libtpu: 0.0.40
codegen_flags: <defaults>
</compile_context>

<pallas_src>
import functools

import jax
import jax.numpy as jnp
from jax.experimental import pallas as pl
from jax.experimental.pallas import tpu as pltpu


def _round_up(n, m):
    return (n + m - 1) // m * m


# --------------------------------------------------------------------------- #
# Single-pass kernel: one grid step per batch; whole (C, HW) slab in VMEM.
# --------------------------------------------------------------------------- #
def _se_single_pass_kernel(x_ref, w1t_ref, w2t_ref, out_ref, *, inv_hw):
    # x_ref/out_ref: (1, C, HW) native dtype; weights f32, VMEM resident.
    x = x_ref[...].astype(jnp.float32)                        # (1, C, HW)
    pooled = jnp.sum(x, axis=-1) * inv_hw                     # (1, C)
    h = jnp.dot(pooled, w1t_ref[...], preferred_element_type=jnp.float32)
    h = jnp.maximum(h, 0.0)                                   # ReLU
    logits = jnp.dot(h, w2t_ref[...], preferred_element_type=jnp.float32)
    # torch Hardsigmoid: clip(x / 6 + 0.5, 0, 1)
    alpha = jnp.clip(logits * (1.0 / 6.0) + 0.5, 0.0, 1.0)    # (1, C)
    out_ref[...] = (x * alpha[:, :, None]).astype(out_ref.dtype)


# --------------------------------------------------------------------------- #
# Streaming fallback: grid (B, 2, n_s).  Phase 0 streams x tiles and
# accumulates the per-channel sum in a lane-chunked scratch; the excitation
# MLP runs once per batch on the last pooling tile.  Phase 1 re-streams x
# tiles and writes x * alpha.
# --------------------------------------------------------------------------- #
def _se_streaming_kernel(x_ref, w1t_ref, w2t_ref, out_ref, sum_ref, alpha_ref,
                         *, inv_hw, hw, tile_s, mask_remainder):
    phase = pl.program_id(1)           # 0 = pool + excite, 1 = rescale
    s = pl.program_id(2)               # spatial tile index
    last_s = pl.num_programs(2) - 1

    @pl.when(phase == 0)
    def _pool_phase():
        @pl.when(s == 0)
        def _init():
            sum_ref[...] = jnp.zeros_like(sum_ref)
            # Defensive: during phase 0 the output block index is pinned to
            # (b, 0, 0) and is not expected to be written back (revisit
            # semantics); zero it so any hypothetical early write-back still
            # carries defined data (phase 1 overwrites it with real tiles).
            out_ref[...] = jnp.zeros_like(out_ref)

        x = x_ref[...].astype(jnp.float32)                    # (1, C, tile_s)
        if mask_remainder:
            lane = jax.lax.broadcasted_iota(jnp.int32, (1, 1, tile_s), 2)
            x = jnp.where(s * tile_s + lane < hw, x, 0.0)
        # Lane-chunked accumulation: pure VPU adds per tile; the single
        # cross-lane reduce happens once per batch in the excite block.
        acc = x[:, :, 0:128]
        for k in range(1, tile_s // 128):
            acc = acc + x[:, :, k * 128:(k + 1) * 128]
        sum_ref[...] += acc

        @pl.when(s == last_s)
        def _excite():
            pooled = jnp.sum(sum_ref[...], axis=-1) * inv_hw  # (1, C)
            h = jnp.dot(pooled, w1t_ref[...],
                        preferred_element_type=jnp.float32)
            h = jnp.maximum(h, 0.0)
            logits = jnp.dot(h, w2t_ref[...],
                             preferred_element_type=jnp.float32)
            gate = jnp.clip(logits * (1.0 / 6.0) + 0.5, 0.0, 1.0)
            alpha_ref[...] = gate[:, :, None]                 # (1, C, 1)

    @pl.when(phase == 1)
    def _scale_phase():
        # Multiply in the output dtype (bf16 on v6e/v7x halves convert work;
        # the compiler legalizes it on v5e).  OOB lanes of a remainder tile
        # are masked by the partial-block write-back.
        alpha = alpha_ref[...].astype(out_ref.dtype)          # (1, C, 1)
        out_ref[...] = (x_ref[...] * alpha).astype(out_ref.dtype)


def se_attention(x, w1, w2, *, force_streaming=False, stream_tile_elems=None):
    """SEAttention forward.

    x:  (B, C, H, W) activations (any float dtype; kept native through HBM).
    w1: (C//r, C)  fc1 weight (PyTorch Linear layout, bias=False).
    w2: (C, C//r)  fc2 weight (bias=False).
    """
    B, C, H, W = x.shape
    HW = H * W
    Cr = w1.shape[0]
    itemsize = jnp.dtype(x.dtype).itemsize

    x3 = x.reshape(B, C, HW)                     # native dtype, HW on lanes

    # y = x @ W.T layout; zero-pad the bottleneck dim to a full 128-lane width
    # (a mathematical no-op: padded h columns are 0 after ReLU and the padded
    # w2 rows are 0) so both tiny matmuls sit on friendly MXU/lane layouts.
    Crp = max(_round_up(Cr, 128), 128)
    w1t = jnp.zeros((C, Crp), jnp.float32).at[:, :Cr].set(
        jnp.transpose(w1).astype(jnp.float32))
    w2t = jnp.zeros((Crp, C), jnp.float32).at[:Cr, :].set(
        jnp.transpose(w2).astype(jnp.float32))
    weight_bytes = (w1t.size + w2t.size) * 4

    # ---- generation-aware VMEM budget ------------------------------------
    try:
        vmem_cap = int(pltpu.get_tpu_info().vmem_capacity_bytes)
    except Exception:
        vmem_cap = 64 * 1024 * 1024              # conservative: v7x per-TC
    vmem_limit = min(int(vmem_cap * 0.75), 112 * 1024 * 1024)
    single_pass_budget = int(vmem_cap * 0.60)    # ~38 MiB v7x, ~77 MiB v5e/v6e

    slab = C * HW * itemsize                     # one (1, C, HW) native block
    # in x2 + out x2 (double-buffered) + f32 working copies + weights
    single_pass_live = 4 * slab + 2 * C * HW * 4 + weight_bytes
    use_single_pass = (not force_streaming) and (
        single_pass_live <= single_pass_budget)

    def _params(sem):
        return pltpu.CompilerParams(dimension_semantics=sem,
                                    vmem_limit_bytes=vmem_limit)

    if use_single_pass:
        kernel = functools.partial(_se_single_pass_kernel,
                                   inv_hw=1.0 / float(HW))
        out = pl.pallas_call(
            kernel,
            out_shape=jax.ShapeDtypeStruct((B, C, HW), x.dtype),
            grid=(B,),
            in_specs=[
                pl.BlockSpec((1, C, HW), lambda b: (b, 0, 0)),
                pl.BlockSpec((C, Crp), lambda b: (0, 0)),
                pl.BlockSpec((Crp, C), lambda b: (0, 0)),
            ],
            out_specs=pl.BlockSpec((1, C, HW), lambda b: (b, 0, 0)),
            compiler_params=_params(("parallel",)),
        )(x3, w1t, w2t)
        return out.reshape(B, C, H, W)

    # ---- streaming fallback (per-batch slab too big for VMEM) -------------
    if stream_tile_elems is None:
        target_block_bytes = min(2 * 1024 * 1024, vmem_limit // 16)
        tile_s = max(128, (target_block_bytes // (C * itemsize)) // 128 * 128)
    else:
        tile_s = max(128, _round_up(int(stream_tile_elems), 128))
    tile_s = min(tile_s, _round_up(HW, 128))     # multiple of 128, <= ceil(HW)
    n_s = int(pl.cdiv(HW, tile_s))
    mask_remainder = (HW % tile_s) != 0

    kernel = functools.partial(
        _se_streaming_kernel, inv_hw=1.0 / float(HW), hw=HW, tile_s=tile_s,
        mask_remainder=mask_remainder)

    x_index = lambda b, p, s: (b, 0, s)
    try:
        # 3-deep input buffering covers the once-per-batch excite stall at
        # the phase-0 -> phase-1 boundary.
        x_spec = pl.BlockSpec((1, C, tile_s), x_index,
                              pipeline_mode=pl.Buffered(3))
    except Exception:
        x_spec = pl.BlockSpec((1, C, tile_s), x_index)

    out = pl.pallas_call(
        kernel,
        out_shape=jax.ShapeDtypeStruct((B, C, HW), x.dtype),
        grid=(B, 2, n_s),
        in_specs=[
            x_spec,
            pl.BlockSpec((C, Crp), lambda b, p, s: (0, 0)),
            pl.BlockSpec((Crp, C), lambda b, p, s: (0, 0)),
        ],
        # Block index pinned to (b, 0, 0) during the pooling phase (p == 0)
        # so no write-back traffic happens before phase 1 has real tiles.
        out_specs=pl.BlockSpec((1, C, tile_s), lambda b, p, s: (b, 0, s * p)),
        scratch_shapes=[
            pltpu.VMEM((1, C, 128), jnp.float32),   # lane-chunked running sum
            pltpu.VMEM((1, C, 1), jnp.float32),     # per-channel gate alpha
        ],
        compiler_params=_params(("parallel", "arbitrary", "arbitrary")),
    )(x3, w1t, w2t)
    return out.reshape(B, C, H, W)


def se_attention_ref(x, w1, w2):
    """Pure-JAX reference mirroring the PyTorch forward (f32)."""
    q = jnp.mean(x, axis=(2, 3))                      # (B, C)
    h = jnp.maximum(q @ w1.T, 0.0)                    # (B, C//r)
    logits = h @ w2.T                                 # (B, C)
    alpha = jnp.clip(logits / 6.0 + 0.5, 0.0, 1.0)    # hardsigmoid
    return x * alpha[:, :, None, None]


if __name__ == "__main__":
    def run_case(B, C, H, W, reduction, dtype, **kw):
        Cr = max(C // reduction, 1)
        key = jax.random.PRNGKey(0)
        kx, k1, k2 = jax.random.split(key, 3)
        x = jax.random.normal(kx, (B, C, H, W), dtype=jnp.float32).astype(dtype)
        w1 = jax.random.normal(k1, (Cr, C), dtype=jnp.float32) * 0.5
        w2 = jax.random.normal(k2, (C, Cr), dtype=jnp.float32) * 0.5

        out = jax.block_until_ready(se_attention(x, w1, w2, **kw))
        ref = se_attention_ref(x.astype(jnp.float32), w1, w2)
        assert out.shape == (B, C, H, W)
        assert out.dtype == dtype
        tol = 1e-5 if dtype == jnp.float32 else 2e-2
        assert jnp.allclose(out.astype(jnp.float32), ref, atol=tol, rtol=tol), (
            f"mismatch vs reference for case {(B, C, H, W, dtype, kw)}")

    # Single-pass path (primary): whole per-batch slab resident in VMEM.
    run_case(2, 4, 16, 16, 4, jnp.float32)
    run_case(2, 8, 32, 32, 4, jnp.bfloat16)
    # Streaming fallback, exact 128-multiple tiles (no remainder mask).
    run_case(2, 8, 32, 32, 4, jnp.float32,
             force_streaming=True, stream_tile_elems=512)
    # Streaming fallback with cdiv grid + remainder masking (HW = 324).
    run_case(2, 8, 18, 18, 4, jnp.float32,
             force_streaming=True, stream_tile_elems=128)
    run_case(2, 8, 18, 18, 4, jnp.bfloat16,
             force_streaming=True, stream_tile_elems=128)

    print("KERNEL_OK")
</pallas_src>

<mosaic_0001>
module attributes {stable_mosaic.version = 11 : i64} {
  func.func @_se_single_pass_kernel(%arg0: i32, %arg1: memref<1x4x256xf32, #tpu.memory_space<vmem>>, %arg2: memref<4x128xf32, #tpu.memory_space<vmem>>, %arg3: memref<128x4xf32, #tpu.memory_space<vmem>>, %arg4: memref<1x4x256xf32, #tpu.memory_space<vmem>>) attributes {dimension_semantics = [#tpu.dimension_semantics<parallel>], iteration_bounds = array<i64: 2>, scalar_prefetch = 0 : i64, scratch_operands = 0 : i64, tpu.core_type = #tpu.core_type<tc>, window_params = [{transform_indices = @transform_0, window_bounds = array<i64: 1, 4, 256>}, {pipeline_mode = #tpu.pipeline_mode<synchronous>, transform_indices = @transform_1, window_bounds = array<i64: 4, 128>}, {pipeline_mode = #tpu.pipeline_mode<synchronous>, transform_indices = @transform_2, window_bounds = array<i64: 128, 4>}, {transform_indices = @transform_3, window_bounds = array<i64: 1, 4, 256>}]} {
    %c0 = arith.constant 0 : index
    %c0_0 = arith.constant 0 : index
    %c0_1 = arith.constant 0 : index
    %0 = vector.load %arg1[%c0, %c0_0, %c0_1] : memref<1x4x256xf32, #tpu.memory_space<vmem>>, vector<1x4x256xf32>
    %cst = arith.constant dense<0.000000e+00> : vector<1x4xf32>
    %1 = vector.multi_reduction <add>, %0, %cst [2] : vector<1x4x256xf32> to vector<1x4xf32>
    %cst_2 = arith.constant 3.906250e-03 : f32
    %2 = vector.broadcast %cst_2 : f32 to vector<1x4xf32>
    %3 = arith.mulf %1, %2 : vector<1x4xf32>
    %c0_3 = arith.constant 0 : index
    %c0_4 = arith.constant 0 : index
    %4 = vector.load %arg2[%c0_3, %c0_4] : memref<4x128xf32, #tpu.memory_space<vmem>>, vector<4x128xf32>
    %cst_5 = arith.constant dense<0.000000e+00> : vector<1x128xf32>
    %5 = tpu.matmul %3, %4, %cst_5 {dimension_numbers = #tpu.dot_dimension_numbers<[1], [0], [0], [1], [0, 0, 1, 1], [], []>} : vector<1x4xf32>, vector<4x128xf32>, vector<1x128xf32> -> vector<1x128xf32>
    %cst_6 = arith.constant 0.000000e+00 : f32
    %6 = vector.broadcast %cst_6 : f32 to vector<1x128xf32>
    %7 = arith.maximumf %5, %6 : vector<1x128xf32>
    %c0_7 = arith.constant 0 : index
    %c0_8 = arith.constant 0 : index
    %8 = vector.load %arg3[%c0_7, %c0_8] : memref<128x4xf32, #tpu.memory_space<vmem>>, vector<128x4xf32>
    %cst_9 = arith.constant dense<0.000000e+00> : vector<1x4xf32>
    %9 = tpu.matmul %7, %8, %cst_9 {dimension_numbers = #tpu.dot_dimension_numbers<[1], [0], [0], [1], [0, 0, 1, 1], [], []>} : vector<1x128xf32>, vector<128x4xf32>, vector<1x4xf32> -> vector<1x4xf32>
    %cst_10 = arith.constant 0.166666672 : f32
    %10 = vector.broadcast %cst_10 : f32 to vector<1x4xf32>
    %11 = arith.mulf %9, %10 : vector<1x4xf32>
    %cst_11 = arith.constant 5.000000e-01 : f32
    %12 = vector.broadcast %cst_11 : f32 to vector<1x4xf32>
    %13 = arith.addf %11, %12 : vector<1x4xf32>
    %cst_12 = arith.constant 0.000000e+00 : f32
    %cst_13 = arith.constant 1.000000e+00 : f32
    %14 = vector.broadcast %cst_12 : f32 to vector<1x4xf32>
    %15 = arith.maximumf %14, %13 : vector<1x4xf32>
    %16 = vector.broadcast %cst_13 : f32 to vector<1x4xf32>
    %17 = arith.minimumf %16, %15 : vector<1x4xf32>
    %18 = vector.shape_cast %17 : vector<1x4xf32> to vector<1x4x1xf32>
    %19 = vector.broadcast %18 : vector<1x4x1xf32> to vector<1x4x256xf32>
    %20 = arith.mulf %0, %19 : vector<1x4x256xf32>
    %c0_14 = arith.constant 0 : index
    %c0_15 = arith.constant 0 : index
    %c0_16 = arith.constant 0 : index
    %21 = vector.load %arg4[%c0_14, %c0_15, %c0_16] : memref<1x4x256xf32, #tpu.memory_space<vmem>>, vector<1x4x256xf32>
    tpu.vector_store %arg4[%c0_14, %c0_15, %c0_16], %20 {strides = array<i32>} : memref<1x4x256xf32, #tpu.memory_space<vmem>>, vector<1x4x256xf32>,
    return
  }
  func.func @transform_0(%arg0: i32) -> (i32, i32, i32) {
    %c0_i32 = arith.constant 0 : i32
    %c0_i32_0 = arith.constant 0 : i32
    %c0_i32_1 = arith.constant 0 : i32
    return %arg0, %c0_i32, %c0_i32_0 : i32, i32, i32
  }
  func.func @transform_1(%arg0: i32) -> (i32, i32) {
    %c0_i32 = arith.constant 0 : i32
    %c0_i32_0 = arith.constant 0 : i32
    %c0_i32_1 = arith.constant 0 : i32
    return %c0_i32, %c0_i32_0 : i32, i32
  }
  func.func @transform_2(%arg0: i32) -> (i32, i32) {
    %c0_i32 = arith.constant 0 : i32
    %c0_i32_0 = arith.constant 0 : i32
    %c0_i32_1 = arith.constant 0 : i32
    return %c0_i32, %c0_i32_0 : i32, i32
  }
  func.func @transform_3(%arg0: i32) -> (i32, i32, i32) {
    %c0_i32 = arith.constant 0 : i32
    %c0_i32_0 = arith.constant 0 : i32
    %c0_i32_1 = arith.constant 0 : i32
    return %arg0, %c0_i32, %c0_i32_0 : i32, i32, i32
  }
}

</mosaic_0001>

<llo_original>
// kernel: tpu_custom_call.1
$region0: #{tpu_custom_call.1}
  #allocation0 [shape = 'u32[]', space=smem, size = 0x4, offset = 0x4, fixed_abs, tag = 'smem constant byte address 0x4 - core index']
  #allocation1 [shape = 'u32[72,128]{1,0:T(1,128)}', space=vmem, size = 0x9000, scoped, tag = 'internal scratch']
  %s0 = inlined_call_operand.vmem [shape: f32[2,4,256], index: 0, kind: input, shape index: {}]
  %s1 = inlined_call_operand.vmem [shape: f32[4,128], index: 1, kind: input, shape index: {}]
  %s2 = inlined_call_operand.vmem [shape: f32[128,4], index: 2, kind: input, shape index: {}]
  %s3 = inlined_call_operand.hbm [shape: f32[2,4,256], index: 3, kind: output, shape index: {}]
  %s4 = sld [smem:[#allocation0]]
  $region45: #{tpu_custom_call.1} parent=0
    _
  %s6 = ssub.s32 1, %s4
  %s7 = scalar_select 0, %s6, %s4
  $region1: #{tpu_custom_call.1} parent=0
    #allocation2 [shape = 'u8[8192]{0}', space=vmem, size = 0x2000, scoped, tag = 'output window, operand 0']
    #allocation3 [shape = 's32[2]{0}', space=sflag, size = 0x8, scoped, tag = 'scoped memory for tpu_custom_call.1']
    %8 = vsyncpa [#allocation3], 0
    %s9 = scalar_lea.sflag [#allocation3], 1
    %10 = vsyncpa %s9, 0
    loop: start=0, step=1, limit=4
    $region2: #{tpu_custom_call.1} parent=1 // loop_pre_header
      _
    $region3: #{tpu_custom_call.1} parent=1 // loop_header
      %s12 = sphi 0, %s16
      %p13 = scmp.ge.s32.totalorder %s12, 4
      %s22 = sphi 0, %s24
      %s25 = sphi 0, %s22
      %s26 = sphi 0, %s25
      %s42 = sphi 0, %s26
      %s46 = sphi 0, %s46
      %s48 = sphi 0, %s46
      %s49 = sphi 0, %s48
      %s63 = sphi 0, %s49
      %s67 = sphi 0, %s67
      %s69 = sphi 0, %s67
      %s70 = sphi 0, %s69
      %s84 = sphi 0, %s70
      %s90 = sphi 0, %s92
      %s93 = sphi 0, %s90
      %s94 = sphi 0, %s93
      %s110 = sphi 0, %s94
    $region4: #{tpu_custom_call.1} parent=1 // loop_header_branch
      %15 = sbr.rel (%p13) target = $region8
    $region5: #{tpu_custom_call.1} parent=1 // loop_body
      %s17 = ssub.s32 %s12, 1
      %s18 = ssub.s32 %s12, 2
      %s19 = sadd.s32 %s12, 1
      %s20 = ssub.s32 %s12, %s19
      %p21 = scmp.eq.s32.totalorder %s20, 0
      %s23 = sadd.s32 %s22, 1
      %s24 = scalar_select %p21, %s22, %s23
      %p27 = pneg %p21
      %p28 = scmp.eq.s32.totalorder %s12, 1
      %p29 = por %p27, %p28
      %p30 = scmp.ne.s32.totalorder %s22, %s25
      %p31 = scmp.eq.s32.totalorder %s12, 0
      %p32 = por %p30, %p31
      %p33 = scmp.ne.s32.totalorder %s22, %s25
      %p34 = scmp.eq.s32.totalorder %s17, 1
      %p35 = por %p33, %p34
      %p36 = scmp.ne.s32.totalorder %s25, %s26
      %p37 = scmp.eq.s32.totalorder %s17, 0
      %p38 = por %p36, %p37
      %p39 = scmp.ne.s32.totalorder %s25, %s26
      %p40 = scmp.eq.s32.totalorder %s18, 1
      %p41 = por %p39, %p40
      %p43 = scmp.ne.s32.totalorder %s26, %s42
      %p44 = scmp.eq.s32.totalorder %s18, 0
      %p45 = por %p43, %p44
      %s47 = sadd.s32 %s46, 1
      %p50 = scmp.eq.s32.totalorder %s12, 1
      %p51 = scmp.ne.s32.totalorder %s46, %s48
      %p52 = scmp.eq.s32.totalorder %s12, 0
      %p53 = por %p51, %p52
      %p54 = scmp.ne.s32.totalorder %s46, %s48
      %p55 = scmp.eq.s32.totalorder %s17, 1
      %p56 = por %p54, %p55
      %p57 = scmp.ne.s32.totalorder %s48, %s49
      %p58 = scmp.eq.s32.totalorder %s17, 0
      %p59 = por %p57, %p58
      %p60 = scmp.ne.s32.totalorder %s48, %s49
      %p61 = scmp.eq.s32.totalorder %s18, 1
      %p62 = por %p60, %p61
      %p64 = scmp.ne.s32.totalorder %s49, %s63
      %p65 = scmp.eq.s32.totalorder %s18, 0
      %p66 = por %p64, %p65
      %s68 = sadd.s32 %s67, 1
      %p71 = scmp.eq.s32.totalorder %s12, 1
      %p72 = scmp.ne.s32.totalorder %s67, %s69
      %p73 = scmp.eq.s32.totalorder %s12, 0
      %p74 = por %p72, %p73
      %p75 = scmp.ne.s32.totalorder %s67, %s69
      %p76 = scmp.eq.s32.totalorder %s17, 1
      %p77 = por %p75, %p76
      %p78 = scmp.ne.s32.totalorder %s69, %s70
      %p79 = scmp.eq.s32.totalorder %s17, 0
      %p80 = por %p78, %p79
      %p81 = scmp.ne.s32.totalorder %s69, %s70
      %p82 = scmp.eq.s32.totalorder %s18, 1
      %p83 = por %p81, %p82
      %p85 = scmp.ne.s32.totalorder %s70, %s84
      %p86 = scmp.eq.s32.totalorder %s18, 0
      %p87 = por %p85, %p86
      %s88 = ssub.s32 %s12, %s19
      %p89 = scmp.eq.s32.totalorder %s88, 0
      %s91 = sadd.s32 %s90, 1
      %s92 = scalar_select %p89, %s90, %s91
      %p95 = pneg %p89
      %p96 = scmp.eq.s32.totalorder %s12, 1
      %p97 = por %p95, %p96
      %p98 = scmp.ne.s32.totalorder %s90, %s93
      %p99 = scmp.eq.s32.totalorder %s12, 0
      %p100 = por %p98, %p99
      %p101 = scmp.ne.s32.totalorder %s90, %s93
      %p102 = scmp.eq.s32.totalorder %s17, 1
      %p103 = por %p101, %p102
      %p104 = scmp.ne.s32.totalorder %s93, %s94
      %p105 = scmp.eq.s32.totalorder %s17, 0
      %p106 = por %p104, %p105
      %p107 = scmp.ne.s32.totalorder %s93, %s94
      %p108 = scmp.eq.s32.totalorder %s18, 1
      %p109 = por %p107, %p108
      %p111 = scmp.ne.s32.totalorder %s94, %s110
      %p112 = scmp.eq.s32.totalorder %s18, 0
      %p113 = por %p111, %p112
      %p114 = scmp.le.s32.totalorder 1, %s12
      %p115 = scmp.lt.s32.totalorder %s12, 3
      %p116 = pnand %p114, %p115
      %p117 = pneg %p116
      // Predicated region
      $region9: #{tpu_custom_call.1} parent=5 // pred_check
        _
      $region10: #{tpu_custom_call.1} parent=5 // pred_check_branch
        %119 = sbr.rel (%p116) target = $region12
      $region11: #{tpu_custom_call.1} parent=5 // pred_region
        %s120 = ssub.s32 %s12, 1
        // Predicated region
        $region13: #{tpu_custom_call.1} parent=11 // pred_check
          %p121 = pneg %p59
        $region14: #{tpu_custom_call.1} parent=11 // pred_check_branch
          %123 = sbr.rel (%p121) target = $region16
        $region15: #{tpu_custom_call.1} parent=11 // pred_region
          _
        $region16: #{tpu_custom_call.1} parent=11 // pred_fallthru
          _
        // Predicated region
        $region17: #{tpu_custom_call.1} parent=11 // pred_check
          %p124 = pneg %p80
        $region18: #{tpu_custom_call.1} parent=11 // pred_check_branch
          %126 = sbr.rel (%p124) target = $region20
        $region19: #{tpu_custom_call.1} parent=11 // pred_region
          _
        $region20: #{tpu_custom_call.1} parent=11 // pred_fallthru
          _
      $region12: #{tpu_custom_call.1} parent=5 // pred_fallthru
        _
      %p127 = scmp.lt.s32.totalorder %s12, 2
      // Predicated region
      $region21: #{tpu_custom_call.1} parent=5 // pred_check
        %p128 = pneg %p127
      $region22: #{tpu_custom_call.1} parent=5 // pred_check_branch
        %130 = sbr.rel (%p128) target = $region24
      $region23: #{tpu_custom_call.1} parent=5 // pred_region
        // Predicated region
        $region25: #{tpu_custom_call.1} parent=23 // pred_check
          %p131 = pneg %p32
        $region26: #{tpu_custom_call.1} parent=23 // pred_check_branch
          %133 = sbr.rel (%p131) target = $region28
        $region27: #{tpu_custom_call.1} parent=23 // pred_region
          %p134 = scmp.lt.s32.totalorder %s12, 1
          %s135 = scalar_select %p134, %s12, 1
          %s136 = smul.addr %s135, 2
          %s137 = smul.addr %s136, 4
          %s138 = scalar_lea.vmem %s0, %s137
        $region28: #{tpu_custom_call.1} parent=23 // pred_fallthru
          _
      $region24: #{tpu_custom_call.1} parent=5 // pred_fallthru
        _
      %p139 = scmp.le.s32.totalorder 1, %s12
      %p140 = scmp.lt.s32.totalorder %s12, 3
      %p141 = pnand %p139, %p140
      %p142 = pneg %p141
      // Predicated region
      $region29: #{tpu_custom_call.1} parent=5 // pred_check
        _
      $region30: #{tpu_custom_call.1} parent=5 // pred_check_branch
        %144 = sbr.rel (%p141) target = $region32
      $region31: #{tpu_custom_call.1} parent=5 // pred_region
        %s145 = ssub.s32 %s12, 1
        %p146 = scmp.lt.s32.totalorder %s17, 1
        %s147 = scalar_select %p146, %s17, 1
        %s148 = smul.addr %s147, 2
        %s149 = smul.addr %s148, 4
        %s150 = scalar_lea.vmem %s0, %s149
        %p151 = pneg %p38
        %p152 = pneg %p35
        %p153 = pneg %p59
        %p154 = pneg %p56
        %p155 = pneg %p80
        %p156 = pneg %p77
        %p157 = pneg %p106
        %p158 = pneg %p103
        %s159 = sand.u32 %s93, 1
        %s160 = scalar_lea.sflag [#allocation3], %s159
        %s161 = sand.u32 %s93, 1
        %s162 = smul.addr %s161, 8
        %s163 = scalar_lea.vmem [#allocation2], %s162
        %p164 = scmp.lt.s32.totalorder %s17, 1
        %s165 = scalar_select %p164, %s17, 1
        %s166 = smul.addr %s165, 2
        %s167 = smul.addr %s166, 4
        %s168 = scalar_lea.vmem %s0, %s167
        %v169 = vld [vmem:[%s168] sm:$0xff]
        %171 = vst [vmem:[#allocation1] ss:$2 sm:$0xff] %v169
        %v172 = vld.sshfl [vmem:[#allocation1] sm:$0xff pattern:$0x75316420]
        %v173 = vld.sshfl [vmem:[#allocation1 + $0x8] sm:$0xff pattern:$0x75316420]
        %vm176 = vcmask 1043456
        %v177 = vsel %vm176, %v172, 0.0
        %v178 = vsel %vm176, %v173, 0.0
        %v179 = vadd.f32 %v177, %v178
        %180 = vadd.xlane.f32.xlu0 %v179
        %v181 = vpop.xlane.xlu0 %180
        %v182 = vmul.f32 %v181, 0.00390625
        %v183 = vld [vmem:[%s1] sm:$0xf]
        %v185 = vlaneseq
        %v186 = vand.u32 %v185, 127
        %v187 = vperm.slane %v182, %v186
        %vm188 = vcmask 31744
        %v189 = vsel %vm188, %v187, 0
        %v192 = vsel %vm176, %v183, 0
        %194 = vmatpush.msra.mxu0 0.0
        %195 = vmatpush.msra.mxu0 0.0
        %196 = vmatpush.msra.mxu0 0.0
        %197 = vmatpush.msra.mxu0 0.0
        %198 = vmatpush.msra.mxu0 0.0
        %199 = vmatpush.msra.mxu0 0.0
        %200 = vmatpush.msra.mxu0 0.0
        %201 = vmatpush.msra.mxu0 0.0
        %202 = vmatpush.msra.mxu0 0.0
        %203 = vmatpush.msra.mxu0 0.0
        %204 = vmatpush.msra.mxu0 0.0
        %205 = vmatpush.msra.mxu0 0.0
        %206 = vmatpush.msra.mxu0 0.0
        %207 = vmatpush.msra.mxu0 0.0
        %208 = vmatpush.msra.mxu0 0.0
        %209 = vmatpush.msra.mxu0 %v192
        %210 = vmatmul.f32.gmra.mxu0 %v189
        %v211 = vpop.f32.mrf.mxu0
        %v212 = vadd.f32 0.0, %v211
        %213 = vdwg.mxu0
        %v214 = vmax.f32 %v212, 0.0
        %v215 = vld [vmem:[%s2] sm:$0xff]
        %v216 = vld [vmem:[%s2 + $0x8] sm:$0xff]
        %v217 = vld [vmem:[%s2 + $0x10] sm:$0xff]
        %v218 = vld [vmem:[%s2 + $0x18] sm:$0xff]
        %v219 = vld [vmem:[%s2 + $0x20] sm:$0xff]
        %v220 = vld [vmem:[%s2 + $0x28] sm:$0xff]
        %v221 = vld [vmem:[%s2 + $0x30] sm:$0xff]
        %v222 = vld [vmem:[%s2 + $0x38] sm:$0xff]
        %v223 = vld [vmem:[%s2 + $0x40] sm:$0xff]
        %v224 = vld [vmem:[%s2 + $0x48] sm:$0xff]
        %v225 = vld [vmem:[%s2 + $0x50] sm:$0xff]
        %v226 = vld [vmem:[%s2 + $0x58] sm:$0xff]
        %v227 = vld [vmem:[%s2 + $0x60] sm:$0xff]
        %v228 = vld [vmem:[%s2 + $0x68] sm:$0xff]
        %v229 = vld [vmem:[%s2 + $0x70] sm:$0xff]
        %v230 = vld [vmem:[%s2 + $0x78] sm:$0xff]
        %231 = vmatpush.msra.mxu0 %v230
        %232 = vmatpush.msra.mxu0 %v229
        %233 = vmatpush.msra.mxu0 %v228
        %234 = vmatpush.msra.mxu0 %v227
        %235 = vmatpush.msra.mxu0 %v226
        %236 = vmatpush.msra.mxu0 %v225
        %237 = vmatpush.msra.mxu0 %v224
        %238 = vmatpush.msra.mxu0 %v223
        %239 = vmatpush.msra.mxu0 %v222
        %240 = vmatpush.msra.mxu0 %v221
        %241 = vmatpush.msra.mxu0 %v220
        %242 = vmatpush.msra.mxu0 %v219
        %243 = vmatpush.msra.mxu0 %v218
        %244 = vmatpush.msra.mxu0 %v217
        %245 = vmatpush.msra.mxu0 %v216
        %246 = vmatpush.msra.mxu0 %v215
        %247 = vmatmul.f32.gmra.mxu0 %v214
        %v248 = vpop.f32.mrf.mxu0
        %v249 = vadd.f32 0.0, %v248
        %250 = vdwg.mxu0
        %v251 = vmul.f32 %v249, 0.16666667
        %v252 = vadd.f32 %v251, 0.5
        %v253 = vmax.f32 %v252, 0.0
        %v254 = vmin.f32 %v253, 1.0
        %v255 = vperm.slane %v254, 0
        %v256 = vlaneseq
        %v257 = vshrl.u32 %v256, 7
        %259 = vset.pattern.permute.xlu0 %v257
        %260 = vperm.xlu0 %259, %v255
        %v261 = vpop.permute.xlu0 %260
        %v264 = vunpack.c.l.s4 839922192
        %v265 = vunpack.c.0.s8 %v264
        %v266 = vperm.slane %v261, %v265
        %v268 = vmul.f32 %v169, %v266
        %269 = vst [vmem:[%s163] sm:$0xff] %v268
        %s270 = sand.u32 %s93, 1
        %s271 = scalar_lea.sflag [#allocation3], %s270
        %s272 = sand.u32 %s93, 1
        %s273 = smul.addr %s272, 8
        %s274 = scalar_lea.vmem [#allocation2], %s273
        // Predicated region
        $region33: #{tpu_custom_call.1} parent=31 // pred_check
          %p275 = pneg %p103
        $region34: #{tpu_custom_call.1} parent=31 // pred_check_branch
          %277 = sbr.rel (%p275) target = $region36
        $region35: #{tpu_custom_call.1} parent=31 // pred_region
          %279 = vsyncadd %s271, 0
          %s280 = smul.addr %s17, 2
          %s281 = smul.addr %s280, 4
          %s282 = scalar_lea.hbm %s3, %s281
          %s284 = sshll.u32 %s274, 4
          %s285 = int_to_ptr.vmem [resolvable:$true] %s284
          %s286 = sshll.u32 %s282, 4
          %s287 = int_to_ptr.hbm [resolvable:$true] %s286
          %289 = dma.vmem_to_hbm [thread:$0]  %s285, 128, %s287, %s271
        $region36: #{tpu_custom_call.1} parent=31 // pred_fallthru
          _
      $region32: #{tpu_custom_call.1} parent=5 // pred_fallthru
        _
      %p290 = scmp.le.s32.totalorder 2, %s12
      // Predicated region
      $region37: #{tpu_custom_call.1} parent=5 // pred_check
        %p291 = pneg %p290
      $region38: #{tpu_custom_call.1} parent=5 // pred_check_branch
        %293 = sbr.rel (%p291) target = $region40
      $region39: #{tpu_custom_call.1} parent=5 // pred_region
        %s294 = ssub.s32 %s12, 2
        // Predicated region
        $region41: #{tpu_custom_call.1} parent=39 // pred_check
          %p295 = pneg %p109
        $region42: #{tpu_custom_call.1} parent=39 // pred_check_branch
          %297 = sbr.rel (%p295) target = $region44
        $region43: #{tpu_custom_call.1} parent=39 // pred_region
          %s298 = sand.u32 %s94, 1
          %s299 = scalar_lea.sflag [#allocation3], %s298
          %s300 = sand.u32 %s94, 1
          %s301 = smul.addr %s300, 8
          %s302 = scalar_lea.vmem [#allocation2], %s301
          %304 = dma.done %s299, 128
        $region44: #{tpu_custom_call.1} parent=39 // pred_fallthru
          _
      $region40: #{tpu_custom_call.1} parent=5 // pred_fallthru
        _
    $region6: #{tpu_custom_call.1} parent=1 // loop_footer
      %s16 = sadd.s32 1, %s12
    $region7: #{tpu_custom_call.1} parent=1 // loop_footer_branch
      %11 = sbr.rel target = $region3
    $region8: #{tpu_custom_call.1} parent=1 // loop_exit
      _
    %305 = vsyncpa [#allocation3], 1
    %s306 = scalar_lea.sflag [#allocation3], 1
    %307 = vsyncpa %s306, 1

</llo_original>
